<compile_context>
chip_gen: v6e
topology: v6e:2x2x1
jax: 0.10.0
libtpu: 0.0.40
codegen_flags: <defaults>
</compile_context>

<pallas_src>
import functools
import math

import jax
import jax.numpy as jnp
import numpy as np
from jax.experimental import pallas as pl
from jax.experimental.pallas import tpu as pltpu

# ----------------------------- config ---------------------------------------
D_MODEL = 32
NUM_HEADS = 4
HEAD_DIM = D_MODEL // NUM_HEADS
SEQ_LEN = 8
BATCH = 2
NUM_BUCKETS = 32
MAX_DISTANCE = 128

LANE = 128  # TPU lane width; every kernel-visible last dim is padded to this


# ----------------- relative attention bias (plain-JAX glue) -----------------
def _relative_position_bucket(relative_position, num_buckets=32, max_distance=128):
    # bidirectional=False branch of the PyTorch reference
    rp = -jnp.minimum(relative_position, jnp.zeros_like(relative_position))
    max_exact = num_buckets // 2
    is_small = rp < max_exact
    rp_safe = jnp.maximum(rp, 1)  # avoid log(0); masked out by `where`
    rp_if_large = max_exact + (
        jnp.log(rp_safe.astype(jnp.float32) / max_exact)
        / math.log(max_distance / max_exact)
        * (num_buckets - max_exact)
    ).astype(jnp.int32)
    rp_if_large = jnp.minimum(rp_if_large, num_buckets - 1)
    return jnp.where(is_small, rp, rp_if_large)


def compute_rab(rab_emb, query_length, key_length):
    """Relative attention bias of shape (num_heads, query_length, key_length), f32."""
    ctx = jnp.arange(query_length, dtype=jnp.int32)[:, None]
    mem = jnp.arange(key_length, dtype=jnp.int32)[None, :]
    rel = mem - ctx
    bucket = _relative_position_bucket(rel, NUM_BUCKETS, MAX_DISTANCE)   # (Q, K)
    values = rab_emb[bucket]                                             # (Q, K, H)
    return jnp.transpose(values, (2, 0, 1)).astype(jnp.float32)          # (H, Q, K)


# ------------------------------ Pallas kernel --------------------------------
def paa_kernel(q_ref, k_ref, bias_ref, v_ref, o_ref):
    # One batch per grid step.  Heads are folded into the 128-wide lane dim via
    # the head-block-diagonal K^T / V layout, so the per-batch attention is two
    # full-lane MXU matmuls.  Operands may be bf16; accumulate/bias/silu are f32.
    s = jnp.dot(q_ref[...], k_ref[...],
                preferred_element_type=jnp.float32)                  # (S, 128)
    s = s + bias_ref[...]                    # f32 bias; padded columns stay 0
    att = s * jax.nn.sigmoid(s)              # silu in f32 (EUP); silu(0)=0 on padding
    av = jnp.dot(att.astype(v_ref.dtype), v_ref[...],
                 preferred_element_type=jnp.float32)                 # (S, 128)
    o_ref[...] = av.astype(o_ref.dtype)      # lane-dense (S, 128) unmasked store


def _cost_estimate(B, S, mxu_itemsize, out_itemsize):
    # What the kernel actually executes (padded shapes), per review feedback.
    flops = B * (2 * S * LANE * LANE        # Q @ K^T (block-diag over heads)
                 + 2 * S * LANE * LANE      # att @ V (block-diag over heads)
                 + 4 * S * LANE)            # bias add + silu VPU work
    transcendentals = B * S * LANE          # one sigmoid per score element
    bytes_accessed = (B * (S * LANE + 2 * LANE * LANE) * mxu_itemsize  # q, k, v
                      + S * LANE * 4                                   # bias (once)
                      + B * S * LANE * out_itemsize)                   # output
    return pl.CostEstimate(flops=flops, transcendentals=transcendentals,
                           bytes_accessed=bytes_accessed)


# ------------------------------ forward --------------------------------------
@functools.partial(jax.jit, static_argnames=("mxu_dtype",))
def paa_forward(v, k, q, rab_emb, mxu_dtype=jnp.bfloat16):
    """PointwiseAggregatedAttention.forward(v, k, q) -> (B, S, D)."""
    B, S, D = q.shape
    H, hd = NUM_HEADS, D // NUM_HEADS
    n_kv = H * S
    out_dtype = q.dtype
    # Single-tile path: all heads' keys fit one 128-lane tile.
    assert n_kv <= LANE and D <= LANE and S % 8 == 0
    # TODO(synk): kv-tiled grid axis + VMEM accumulator for H*S > 128.

    # Bias slab (S, 128), f32, shared across the batch grid axis.
    rab = compute_rab(rab_emb, S, S)                                   # (H, S, S)
    bias = jnp.transpose(rab, (1, 0, 2)).reshape(S, n_kv)              # (S, H*S)
    bias = jnp.pad(bias, ((0, 0), (0, LANE - n_kv)))                   # (S, 128) f32

    # MXU operands cast once on the wrapper side; zero padding is exact.
    qc = q.astype(mxu_dtype)
    kc = k.astype(mxu_dtype).reshape(B, S, H, hd)
    vc = v.astype(mxu_dtype).reshape(B, S, H, hd)

    q_slab = jnp.pad(qc, ((0, 0), (0, 0), (0, LANE - D)))              # (B, S, 128)

    # Head-block-diagonal K^T / V slabs per batch, built with H tiny
    # dynamic-update-slices under jit (no eye-einsum broadcast slabs).
    k_t = kc.transpose(0, 2, 3, 1)                                     # (B, H, hd, S)
    v_h = vc.transpose(0, 2, 1, 3)                                     # (B, H, S, hd)
    k_slab = jnp.zeros((B, LANE, LANE), mxu_dtype)
    v_slab = jnp.zeros((B, LANE, LANE), mxu_dtype)
    for h in range(H):  # static, tiny
        k_slab = k_slab.at[:, h * hd:(h + 1) * hd, h * S:(h + 1) * S].set(k_t[:, h])
        v_slab = v_slab.at[:, h * S:(h + 1) * S, h * hd:(h + 1) * hd].set(v_h[:, h])

    out = pl.pallas_call(
        paa_kernel,
        grid=(B,),
        in_specs=[
            pl.BlockSpec((None, S, LANE), lambda b: (b, 0, 0)),        # Q
            pl.BlockSpec((None, LANE, LANE), lambda b: (b, 0, 0)),     # K^T block-diag
            pl.BlockSpec((S, LANE), lambda b: (0, 0)),                 # bias (shared)
            pl.BlockSpec((None, LANE, LANE), lambda b: (b, 0, 0)),     # V block-diag
        ],
        out_specs=pl.BlockSpec((None, S, LANE), lambda b: (b, 0, 0)),
        out_shape=jax.ShapeDtypeStruct((B, S, LANE), out_dtype),
        compiler_params=pltpu.CompilerParams(
            dimension_semantics=("parallel",)),                        # both TCs on v7x
        cost_estimate=_cost_estimate(B, S, jnp.dtype(mxu_dtype).itemsize,
                                     jnp.dtype(out_dtype).itemsize),
    )(q_slab, k_slab, bias, v_slab)

    return out[:, :, :D]                                               # (B, S, D)


# ------------------------- reference (plain JAX) -----------------------------
def paa_reference(v, k, q, rab_emb):
    B, S, D = q.shape
    H, hd = NUM_HEADS, D // NUM_HEADS

    def split_heads(x):
        return x.reshape(B, S, H, hd).transpose(0, 2, 1, 3)            # (B, H, S, hd)

    qh, kh, vh = split_heads(q), split_heads(k), split_heads(v)
    scores = jnp.einsum("bhqd,bhkd->bhqk", qh, kh,
                        precision=jax.lax.Precision.HIGHEST)
    rab = compute_rab(rab_emb, S, S)[None]                              # (1, H, S, S)
    att = jax.nn.silu(scores + rab)
    av = jnp.einsum("bhqk,bhkd->bhqd", att, vh,
                    precision=jax.lax.Precision.HIGHEST)
    return av.transpose(0, 2, 1, 3).reshape(B, S, D)


# ------------------------------ main -----------------------------------------
if __name__ == "__main__":
    key = jax.random.PRNGKey(0)
    kq, kk, kv, ke = jax.random.split(key, 4)
    q = jax.random.normal(kq, (BATCH, SEQ_LEN, D_MODEL), jnp.float32)
    k = jax.random.normal(kk, (BATCH, SEQ_LEN, D_MODEL), jnp.float32)
    v = jax.random.normal(kv, (BATCH, SEQ_LEN, D_MODEL), jnp.float32)
    rab_emb = jax.random.normal(ke, (NUM_BUCKETS, NUM_HEADS), jnp.float32) * 0.02

    ref = jax.block_until_ready(paa_reference(v, k, q, rab_emb))

    # Exact-precision path (f32 MXU operands): tight check of layout / algebra.
    out_f32 = jax.block_until_ready(
        paa_forward(v, k, q, rab_emb, mxu_dtype=jnp.float32))
    np.testing.assert_allclose(np.asarray(out_f32), np.asarray(ref),
                               rtol=1e-4, atol=1e-4)

    # Recommended fast path (bf16 MXU operands, f32 accumulate/bias/silu):
    # loose tolerance reflects bf16 operand rounding vs the exact-f32 reference.
    out_bf16 = jax.block_until_ready(paa_forward(v, k, q, rab_emb))
    np.testing.assert_allclose(np.asarray(out_bf16), np.asarray(ref),
                               rtol=1e-1, atol=1e-1)

    print("KERNEL_OK")
</pallas_src>

<mosaic_0001>
module attributes {stable_mosaic.version = 11 : i64} {
  func.func @paa_kernel(%arg0: i32, %arg1: memref<1x8x128xf32, #tpu.memory_space<vmem>>, %arg2: memref<1x128x128xf32, #tpu.memory_space<vmem>>, %arg3: memref<8x128xf32, #tpu.memory_space<vmem>>, %arg4: memref<1x128x128xf32, #tpu.memory_space<vmem>>, %arg5: memref<1x8x128xf32, #tpu.memory_space<vmem>>) attributes {dimension_semantics = [#tpu.dimension_semantics<parallel>], iteration_bounds = array<i64: 2>, scalar_prefetch = 0 : i64, scratch_operands = 0 : i64, tpu.core_type = #tpu.core_type<tc>, window_params = [{transform_indices = @transform_0, window_bounds = array<i64: 1, 8, 128>}, {transform_indices = @transform_1, window_bounds = array<i64: 1, 128, 128>}, {pipeline_mode = #tpu.pipeline_mode<synchronous>, transform_indices = @transform_2, window_bounds = array<i64: 8, 128>}, {transform_indices = @transform_3, window_bounds = array<i64: 1, 128, 128>}, {transform_indices = @transform_4, window_bounds = array<i64: 1, 8, 128>}]} {
    %c0 = arith.constant 0 : index
    %c0_0 = arith.constant 0 : index
    %c0_1 = arith.constant 0 : index
    %0 = vector.load %arg1[%c0, %c0_0, %c0_1] : memref<1x8x128xf32, #tpu.memory_space<vmem>>, vector<1x8x128xf32>
    %1 = vector.shape_cast %0 : vector<1x8x128xf32> to vector<8x128xf32>
    %c0_2 = arith.constant 0 : index
    %c0_3 = arith.constant 0 : index
    %c0_4 = arith.constant 0 : index
    %2 = vector.load %arg2[%c0_2, %c0_3, %c0_4] : memref<1x128x128xf32, #tpu.memory_space<vmem>>, vector<1x128x128xf32>
    %3 = vector.shape_cast %2 : vector<1x128x128xf32> to vector<128x128xf32>
    %cst = arith.constant dense<0.000000e+00> : vector<8x128xf32>
    %4 = tpu.matmul %1, %3, %cst {dimension_numbers = #tpu.dot_dimension_numbers<[1], [0], [0], [1], [0, 0, 1, 1], [], []>} : vector<8x128xf32>, vector<128x128xf32>, vector<8x128xf32> -> vector<8x128xf32>
    %c0_5 = arith.constant 0 : index
    %c0_6 = arith.constant 0 : index
    %5 = vector.load %arg3[%c0_5, %c0_6] : memref<8x128xf32, #tpu.memory_space<vmem>>, vector<8x128xf32>
    %6 = arith.addf %4, %5 : vector<8x128xf32>
    %7 = arith.negf %6 : vector<8x128xf32>
    %8 = math.exp %7 : vector<8x128xf32>
    %cst_7 = arith.constant 1.000000e+00 : f32
    %9 = vector.broadcast %cst_7 : f32 to vector<8x128xf32>
    %10 = arith.addf %9, %8 : vector<8x128xf32>
    %11 = arith.divf %9, %10 : vector<8x128xf32>
    %12 = arith.mulf %6, %11 : vector<8x128xf32>
    %c0_8 = arith.constant 0 : index
    %c0_9 = arith.constant 0 : index
    %c0_10 = arith.constant 0 : index
    %13 = vector.load %arg4[%c0_8, %c0_9, %c0_10] : memref<1x128x128xf32, #tpu.memory_space<vmem>>, vector<1x128x128xf32>
    %14 = vector.shape_cast %13 : vector<1x128x128xf32> to vector<128x128xf32>
    %cst_11 = arith.constant dense<0.000000e+00> : vector<8x128xf32>
    %15 = tpu.matmul %12, %14, %cst_11 {dimension_numbers = #tpu.dot_dimension_numbers<[1], [0], [0], [1], [0, 0, 1, 1], [], []>} : vector<8x128xf32>, vector<128x128xf32>, vector<8x128xf32> -> vector<8x128xf32>
    %c0_12 = arith.constant 0 : index
    %c0_13 = arith.constant 0 : index
    %c0_14 = arith.constant 0 : index
    %16 = vector.load %arg5[%c0_12, %c0_13, %c0_14] : memref<1x8x128xf32, #tpu.memory_space<vmem>>, vector<1x8x128xf32>
    %17 = vector.shape_cast %16 : vector<1x8x128xf32> to vector<8x128xf32>
    %18 = vector.shape_cast %15 : vector<8x128xf32> to vector<1x8x128xf32>
    tpu.vector_store %arg5[%c0_12, %c0_13, %c0_14], %18 {strides = array<i32>} : memref<1x8x128xf32, #tpu.memory_space<vmem>>, vector<1x8x128xf32>,
    return
  }
  func.func @transform_0(%arg0: i32) -> (i32, i32, i32) {
    %c0_i32 = arith.constant 0 : i32
    %c0_i32_0 = arith.constant 0 : i32
    %c0_i32_1 = arith.constant 0 : i32
    return %arg0, %c0_i32, %c0_i32_0 : i32, i32, i32
  }
  func.func @transform_1(%arg0: i32) -> (i32, i32, i32) {
    %c0_i32 = arith.constant 0 : i32
    %c0_i32_0 = arith.constant 0 : i32
    %c0_i32_1 = arith.constant 0 : i32
    return %arg0, %c0_i32, %c0_i32_0 : i32, i32, i32
  }
  func.func @transform_2(%arg0: i32) -> (i32, i32) {
    %c0_i32 = arith.constant 0 : i32
    %c0_i32_0 = arith.constant 0 : i32
    %c0_i32_1 = arith.constant 0 : i32
    return %c0_i32, %c0_i32_0 : i32, i32
  }
  func.func @transform_3(%arg0: i32) -> (i32, i32, i32) {
    %c0_i32 = arith.constant 0 : i32
    %c0_i32_0 = arith.constant 0 : i32
    %c0_i32_1 = arith.constant 0 : i32
    return %arg0, %c0_i32, %c0_i32_0 : i32, i32, i32
  }
  func.func @transform_4(%arg0: i32) -> (i32, i32, i32) {
    %c0_i32 = arith.constant 0 : i32
    %c0_i32_0 = arith.constant 0 : i32
    %c0_i32_1 = arith.constant 0 : i32
    return %arg0, %c0_i32, %c0_i32_0 : i32, i32, i32
  }
}

</mosaic_0001>

<llo_original>
// kernel: paa_forward.1
$region0: #{paa_forward.1}
  #allocation0 [shape = 'u32[]', space=smem, size = 0x4, offset = 0x4, fixed_abs, tag = 'smem constant byte address 0x4 - core index']
  #allocation1 [shape = 'u32[144,128]{1,0:T(1,128)}', space=vmem, size = 0x12000, scoped, tag = 'internal scratch']
  %s0 = inlined_call_operand.vmem [shape: f32[2,8,128], index: 0, kind: input, shape index: {}]
  %s1 = inlined_call_operand.vmem [shape: f32[2,128,128], index: 1, kind: input, shape index: {}]
  %s2 = inlined_call_operand.vmem [shape: f32[8,128], index: 2, kind: input, shape index: {}]
  %s3 = inlined_call_operand.vmem [shape: f32[2,128,128], index: 3, kind: input, shape index: {}]
  %s4 = inlined_call_operand.hbm [shape: f32[2,8,128], index: 4, kind: output, shape index: {}]
  %s5 = sld [smem:[#allocation0]]
  $region49: #{paa_forward.1} parent=0
    _
  %s7 = ssub.s32 1, %s5
  %s8 = scalar_select 0, %s7, %s5
  $region1: #{paa_forward.1} parent=0
    #allocation2 [shape = 'u8[8192]{0}', space=vmem, size = 0x2000, scoped, tag = 'output window, operand 0']
    #allocation3 [shape = 's32[2]{0}', space=sflag, size = 0x8, scoped, tag = 'scoped memory for paa_forward.1']
    %9 = vsyncpa [#allocation3], 0
    %s10 = scalar_lea.sflag [#allocation3], 1
    %11 = vsyncpa %s10, 0
    loop: start=0, step=1, limit=4
    $region2: #{paa_forward.1} parent=1 // loop_pre_header
      _
    $region3: #{paa_forward.1} parent=1 // loop_header
      %s13 = sphi 0, %s17
      %p14 = scmp.ge.s32.totalorder %s13, 4
      %s23 = sphi 0, %s25
      %s26 = sphi 0, %s23
      %s27 = sphi 0, %s26
      %s43 = sphi 0, %s27
      %s49 = sphi 0, %s51
      %s52 = sphi 0, %s49
      %s53 = sphi 0, %s52
      %s69 = sphi 0, %s53
      %s73 = sphi 0, %s73
      %s75 = sphi 0, %s73
      %s76 = sphi 0, %s75
      %s90 = sphi 0, %s76
      %s96 = sphi 0, %s98
      %s99 = sphi 0, %s96
      %s100 = sphi 0, %s99
      %s116 = sphi 0, %s100
      %s122 = sphi 0, %s124
      %s125 = sphi 0, %s122
      %s126 = sphi 0, %s125
      %s142 = sphi 0, %s126
    $region4: #{paa_forward.1} parent=1 // loop_header_branch
      %16 = sbr.rel (%p14) target = $region8
    $region5: #{paa_forward.1} parent=1 // loop_body
      %s18 = ssub.s32 %s13, 1
      %s19 = ssub.s32 %s13, 2
      %s20 = sadd.s32 %s13, 1
      %s21 = ssub.s32 %s13, %s20
      %p22 = scmp.eq.s32.totalorder %s21, 0
      %s24 = sadd.s32 %s23, 1
      %s25 = scalar_select %p22, %s23, %s24
      %p28 = pneg %p22
      %p29 = scmp.eq.s32.totalorder %s13, 1
      %p30 = por %p28, %p29
      %p31 = scmp.ne.s32.totalorder %s23, %s26
      %p32 = scmp.eq.s32.totalorder %s13, 0
      %p33 = por %p31, %p32
      %p34 = scmp.ne.s32.totalorder %s23, %s26
      %p35 = scmp.eq.s32.totalorder %s18, 1
      %p36 = por %p34, %p35
      %p37 = scmp.ne.s32.totalorder %s26, %s27
      %p38 = scmp.eq.s32.totalorder %s18, 0
      %p39 = por %p37, %p38
      %p40 = scmp.ne.s32.totalorder %s26, %s27
      %p41 = scmp.eq.s32.totalorder %s19, 1
      %p42 = por %p40, %p41
      %p44 = scmp.ne.s32.totalorder %s27, %s43
      %p45 = scmp.eq.s32.totalorder %s19, 0
      %p46 = por %p44, %p45
      %s47 = ssub.s32 %s13, %s20
      %p48 = scmp.eq.s32.totalorder %s47, 0
      %s50 = sadd.s32 %s49, 1
      %s51 = scalar_select %p48, %s49, %s50
      %p54 = pneg %p48
      %p55 = scmp.eq.s32.totalorder %s13, 1
      %p56 = por %p54, %p55
      %p57 = scmp.ne.s32.totalorder %s49, %s52
      %p58 = scmp.eq.s32.totalorder %s13, 0
      %p59 = por %p57, %p58
      %p60 = scmp.ne.s32.totalorder %s49, %s52
      %p61 = scmp.eq.s32.totalorder %s18, 1
      %p62 = por %p60, %p61
      %p63 = scmp.ne.s32.totalorder %s52, %s53
      %p64 = scmp.eq.s32.totalorder %s18, 0
      %p65 = por %p63, %p64
      %p66 = scmp.ne.s32.totalorder %s52, %s53
      %p67 = scmp.eq.s32.totalorder %s19, 1
      %p68 = por %p66, %p67
      %p70 = scmp.ne.s32.totalorder %s53, %s69
      %p71 = scmp.eq.s32.totalorder %s19, 0
      %p72 = por %p70, %p71
      %s74 = sadd.s32 %s73, 1
      %p77 = scmp.eq.s32.totalorder %s13, 1
      %p78 = scmp.ne.s32.totalorder %s73, %s75
      %p79 = scmp.eq.s32.totalorder %s13, 0
      %p80 = por %p78, %p79
      %p81 = scmp.ne.s32.totalorder %s73, %s75
      %p82 = scmp.eq.s32.totalorder %s18, 1
      %p83 = por %p81, %p82
      %p84 = scmp.ne.s32.totalorder %s75, %s76
      %p85 = scmp.eq.s32.totalorder %s18, 0
      %p86 = por %p84, %p85
      %p87 = scmp.ne.s32.totalorder %s75, %s76
      %p88 = scmp.eq.s32.totalorder %s19, 1
      %p89 = por %p87, %p88
      %p91 = scmp.ne.s32.totalorder %s76, %s90
      %p92 = scmp.eq.s32.totalorder %s19, 0
      %p93 = por %p91, %p92
      %s94 = ssub.s32 %s13, %s20
      %p95 = scmp.eq.s32.totalorder %s94, 0
      %s97 = sadd.s32 %s96, 1
      %s98 = scalar_select %p95, %s96, %s97
      %p101 = pneg %p95
      %p102 = scmp.eq.s32.totalorder %s13, 1
      %p103 = por %p101, %p102
      %p104 = scmp.ne.s32.totalorder %s96, %s99
      %p105 = scmp.eq.s32.totalorder %s13, 0
      %p106 = por %p104, %p105
      %p107 = scmp.ne.s32.totalorder %s96, %s99
      %p108 = scmp.eq.s32.totalorder %s18, 1
      %p109 = por %p107, %p108
      %p110 = scmp.ne.s32.totalorder %s99, %s100
      %p111 = scmp.eq.s32.totalorder %s18, 0
      %p112 = por %p110, %p111
      %p113 = scmp.ne.s32.totalorder %s99, %s100
      %p114 = scmp.eq.s32.totalorder %s19, 1
      %p115 = por %p113, %p114
      %p117 = scmp.ne.s32.totalorder %s100, %s116
      %p118 = scmp.eq.s32.totalorder %s19, 0
      %p119 = por %p117, %p118
      %s120 = ssub.s32 %s13, %s20
      %p121 = scmp.eq.s32.totalorder %s120, 0
      %s123 = sadd.s32 %s122, 1
      %s124 = scalar_select %p121, %s122, %s123
      %p127 = pneg %p121
      %p128 = scmp.eq.s32.totalorder %s13, 1
      %p129 = por %p127, %p128
      %p130 = scmp.ne.s32.totalorder %s122, %s125
      %p131 = scmp.eq.s32.totalorder %s13, 0
      %p132 = por %p130, %p131
      %p133 = scmp.ne.s32.totalorder %s122, %s125
      %p134 = scmp.eq.s32.totalorder %s18, 1
      %p135 = por %p133, %p134
      %p136 = scmp.ne.s32.totalorder %s125, %s126
      %p137 = scmp.eq.s32.totalorder %s18, 0
      %p138 = por %p136, %p137
      %p139 = scmp.ne.s32.totalorder %s125, %s126
      %p140 = scmp.eq.s32.totalorder %s19, 1
      %p141 = por %p139, %p140
      %p143 = scmp.ne.s32.totalorder %s126, %s142
      %p144 = scmp.eq.s32.totalorder %s19, 0
      %p145 = por %p143, %p144
      %p146 = scmp.le.s32.totalorder 1, %s13
      %p147 = scmp.lt.s32.totalorder %s13, 3
      %p148 = pnand %p146, %p147
      %p149 = pneg %p148
      // Predicated region
      $region9: #{paa_forward.1} parent=5 // pred_check
        _
      $region10: #{paa_forward.1} parent=5 // pred_check_branch
        %151 = sbr.rel (%p148) target = $region12
      $region11: #{paa_forward.1} parent=5 // pred_region
        %s152 = ssub.s32 %s13, 1
        // Predicated region
        $region13: #{paa_forward.1} parent=11 // pred_check
          %p153 = pneg %p86
        $region14: #{paa_forward.1} parent=11 // pred_check_branch
          %155 = sbr.rel (%p153) target = $region16
        $region15: #{paa_forward.1} parent=11 // pred_region
          _
        $region16: #{paa_forward.1} parent=11 // pred_fallthru
          _
      $region12: #{paa_forward.1} parent=5 // pred_fallthru
        _
      %p156 = scmp.lt.s32.totalorder %s13, 2
      // Predicated region
      $region17: #{paa_forward.1} parent=5 // pred_check
        %p157 = pneg %p156
      $region18: #{paa_forward.1} parent=5 // pred_check_branch
        %159 = sbr.rel (%p157) target = $region20
      $region19: #{paa_forward.1} parent=5 // pred_region
        // Predicated region
        $region21: #{paa_forward.1} parent=19 // pred_check
          %p160 = pneg %p33
        $region22: #{paa_forward.1} parent=19 // pred_check_branch
          %162 = sbr.rel (%p160) target = $region24
        $region23: #{paa_forward.1} parent=19 // pred_region
          %p163 = scmp.lt.s32.totalorder %s13, 1
          %s164 = scalar_select %p163, %s13, 1
          %s165 = smul.addr %s164, 8
          %s166 = scalar_lea.vmem %s0, %s165
        $region24: #{paa_forward.1} parent=19 // pred_fallthru
          _
        // Predicated region
        $region25: #{paa_forward.1} parent=19 // pred_check
          %p167 = pneg %p59
        $region26: #{paa_forward.1} parent=19 // pred_check_branch
          %169 = sbr.rel (%p167) target = $region28
        $region27: #{paa_forward.1} parent=19 // pred_region
          %p170 = scmp.lt.s32.totalorder %s13, 1
          %s171 = scalar_select %p170, %s13, 1
          %s172 = smul.addr %s171, 16
          %s173 = smul.addr %s172, 8
          %s174 = scalar_lea.vmem %s1, %s173
        $region28: #{paa_forward.1} parent=19 // pred_fallthru
          _
        // Predicated region
        $region29: #{paa_forward.1} parent=19 // pred_check
          %p175 = pneg %p106
        $region30: #{paa_forward.1} parent=19 // pred_check_branch
          %177 = sbr.rel (%p175) target = $region32
        $region31: #{paa_forward.1} parent=19 // pred_region
          %p178 = scmp.lt.s32.totalorder %s13, 1
          %s179 = scalar_select %p178, %s13, 1
          %s180 = smul.addr %s179, 16
          %s181 = smul.addr %s180, 8
          %s182 = scalar_lea.vmem %s3, %s181
        $region32: #{paa_forward.1} parent=19 // pred_fallthru
          _
      $region20: #{paa_forward.1} parent=5 // pred_fallthru
        _
      %p183 = scmp.le.s32.totalorder 1, %s13
      %p184 = scmp.lt.s32.totalorder %s13, 3
      %p185 = pnand %p183, %p184
      %p186 = pneg %p185
      // Predicated region
      $region33: #{paa_forward.1} parent=5 // pred_check
        _
      $region34: #{paa_forward.1} parent=5 // pred_check_branch
        %188 = sbr.rel (%p185) target = $region36
      $region35: #{paa_forward.1} parent=5 // pred_region
        %s189 = ssub.s32 %s13, 1
        %p190 = scmp.lt.s32.totalorder %s18, 1
        %s191 = scalar_select %p190, %s18, 1
        %s192 = smul.addr %s191, 8
        %s193 = scalar_lea.vmem %s0, %s192
        %p194 = pneg %p39
        %p195 = pneg %p36
        %p196 = scmp.lt.s32.totalorder %s18, 1
        %s197 = scalar_select %p196, %s18, 1
        %s198 = smul.addr %s197, 16
        %s199 = smul.addr %s198, 8
        %s200 = scalar_lea.vmem %s1, %s199
        %p201 = pneg %p65
        %p202 = pneg %p62
        %p203 = pneg %p86
        %p204 = pneg %p83
        %p205 = scmp.lt.s32.totalorder %s18, 1
        %s206 = scalar_select %p205, %s18, 1
        %s207 = smul.addr %s206, 16
        %s208 = smul.addr %s207, 8
        %s209 = scalar_lea.vmem %s3, %s208
        %p210 = pneg %p112
        %p211 = pneg %p109
        %p212 = pneg %p138
        %p213 = pneg %p135
        %s214 = sand.u32 %s125, 1
        %s215 = scalar_lea.sflag [#allocation3], %s214
        %s216 = sand.u32 %s125, 1
        %s217 = smul.addr %s216, 8
        %s218 = scalar_lea.vmem [#allocation2], %s217
        %p219 = scmp.lt.s32.totalorder %s18, 1
        %s220 = scalar_select %p219, %s18, 1
        %s221 = smul.addr %s220, 8
        %s222 = scalar_lea.vmem %s0, %s221
        %p223 = scmp.lt.s32.totalorder %s18, 1
        %s224 = scalar_select %p223, %s18, 1
        %s225 = smul.addr %s224, 16
        %s226 = smul.addr %s225, 8
        %s227 = scalar_lea.vmem %s1, %s226
        %p228 = scmp.lt.s32.totalorder %s18, 1
        %s229 = scalar_select %p228, %s18, 1
        %s230 = smul.addr %s229, 16
        %s231 = smul.addr %s230, 8
        %s232 = scalar_lea.vmem %s3, %s231
        %v233 = vld [vmem:[%s222] sm:$0xff]
        %v234 = vld [vmem:[%s227] sm:$0xff]
        %v235 = vld [vmem:[%s227 + $0x8] sm:$0xff]
        %v236 = vld [vmem:[%s227 + $0x10] sm:$0xff]
        %v237 = vld [vmem:[%s227 + $0x18] sm:$0xff]
        %v238 = vld [vmem:[%s227 + $0x20] sm:$0xff]
        %v239 = vld [vmem:[%s227 + $0x28] sm:$0xff]
        %v240 = vld [vmem:[%s227 + $0x30] sm:$0xff]
        %v241 = vld [vmem:[%s227 + $0x38] sm:$0xff]
        %v242 = vld [vmem:[%s227 + $0x40] sm:$0xff]
        %v243 = vld [vmem:[%s227 + $0x48] sm:$0xff]
        %v244 = vld [vmem:[%s227 + $0x50] sm:$0xff]
        %v245 = vld [vmem:[%s227 + $0x58] sm:$0xff]
        %v246 = vld [vmem:[%s227 + $0x60] sm:$0xff]
        %v247 = vld [vmem:[%s227 + $0x68] sm:$0xff]
        %v248 = vld [vmem:[%s227 + $0x70] sm:$0xff]
        %v249 = vld [vmem:[%s227 + $0x78] sm:$0xff]
        %v250 = vld [vmem:[%s2] sm:$0xff]
        %251 = vmatprep.subr.mxu0 0.0
        %252 = vmatpush1.msra.mxu0 %v249
        %253 = vmatprep.subr.mxu0 0.0
        %254 = vmatpush1.msra.mxu0 %v248
        %255 = vmatprep.subr.mxu0 0.0
        %256 = vmatpush1.msra.mxu0 %v247
        %257 = vmatprep.subr.mxu0 0.0
        %258 = vmatpush1.msra.mxu0 %v246
        %259 = vmatprep.subr.mxu0 0.0
        %260 = vmatpush1.msra.mxu0 %v245
        %261 = vmatprep.subr.mxu0 0.0
        %262 = vmatpush1.msra.mxu0 %v244
        %263 = vmatprep.subr.mxu0 0.0
        %264 = vmatpush1.msra.mxu0 %v243
        %265 = vmatprep.subr.mxu0 0.0
        %266 = vmatpush1.msra.mxu0 %v242
        %267 = vmatprep.subr.mxu0 0.0
        %268 = vmatpush1.msra.mxu0 %v241
        %269 = vmatprep.subr.mxu0 0.0
        %270 = vmatpush1.msra.mxu0 %v240
        %271 = vmatprep.subr.mxu0 0.0
        %272 = vmatpush1.msra.mxu0 %v239
        %273 = vmatprep.subr.mxu0 0.0
        %274 = vmatpush1.msra.mxu0 %v238
        %275 = vmatprep.subr.mxu0 0.0
        %276 = vmatpush1.msra.mxu0 %v237
        %277 = vmatprep.subr.mxu0 0.0
        %278 = vmatpush1.msra.mxu0 %v236
        %279 = vmatprep.subr.mxu0 0.0
        %280 = vmatpush1.msra.mxu0 %v235
        %281 = vmatprep.subr.mxu0 0.0
        %282 = vmatpush1.msra.mxu0 %v234
        %283 = vmatprep.subr.mxu0 0.0
        %284 = vmatpush2.msra.mxu0 0.0
        %285 = vmatprep.subr.mxu0 0.0
        %286 = vmatpush2.msra.mxu0 0.0
        %287 = vmatprep.subr.mxu0 0.0
        %288 = vmatpush2.msra.mxu0 0.0
        %289 = vmatprep.subr.mxu0 0.0
        %290 = vmatpush2.msra.mxu0 0.0
        %291 = vmatprep.subr.mxu0 0.0
        %292 = vmatpush2.msra.mxu0 0.0
        %293 = vmatprep.subr.mxu0 0.0
        %294 = vmatpush2.msra.mxu0 0.0
        %295 = vmatprep.subr.mxu0 0.0
        %296 = vmatpush2.msra.mxu0 0.0
        %297 = vmatprep.subr.mxu0 0.0
        %298 = vmatpush2.msra.mxu0 0.0
        %299 = vmatprep.subr.mxu0 0.0
        %300 = vmatpush2.msra.mxu0 0.0
        %301 = vmatprep.subr.mxu0 0.0
        %302 = vmatpush2.msra.mxu0 0.0
        %303 = vmatprep.subr.mxu0 0.0
        %304 = vmatpush2.msra.mxu0 0.0
        %305 = vmatprep.subr.mxu0 0.0
        %306 = vmatpush2.msra.mxu0 0.0
        %307 = vmatprep.subr.mxu0 0.0
        %308 = vmatpush2.msra.mxu0 0.0
        %309 = vmatprep.subr.mxu0 0.0
        %310 = vmatpush2.msra.mxu0 0.0
        %311 = vmatprep.subr.mxu0 0.0
        %312 = vmatpush2.msra.mxu0 0.0
        %313 = vmatprep.subr.mxu0 0.0
        %314 = vmatpush2.msra.mxu0 0.0
        %315 = vmatprep.mubr.f32.mxu0 0.0
        %316 = vmatmul.mubr.f32.gmra.mxu0 %v233
        %v317 = vpop.f32.mrf.mxu0
        %v318 = vadd.f32 %v250, %v317
        %v319 = vpop.f32.mrf.mxu0
        %320 = vdwg.mxu0
        %v321 = vxor.u32 %v318, 2147483648
        %v322 = vmul.f32 %v321, 1.442695
        %v323 = vpow.pop %v322
        %v324 = vadd.f32 %v323, 1.0
        %v325 = vrcp.pop %v324
        %v326 = vmul.f32 1.0, %v325
        %v327 = vmul.f32 %v318, %v326
        %v328 = vld [vmem:[%s232] sm:$0xff]
        %v329 = vld [vmem:[%s232 + $0x8] sm:$0xff]
        %v330 = vld [vmem:[%s232 + $0x10] sm:$0xff]
        %v331 = vld [vmem:[%s232 + $0x18] sm:$0xff]
        %v332 = vld [vmem:[%s232 + $0x20] sm:$0xff]
        %v333 = vld [vmem:[%s232 + $0x28] sm:$0xff]
        %v334 = vld [vmem:[%s232 + $0x30] sm:$0xff]
        %v335 = vld [vmem:[%s232 + $0x38] sm:$0xff]
        %v336 = vld [vmem:[%s232 + $0x40] sm:$0xff]
        %v337 = vld [vmem:[%s232 + $0x48] sm:$0xff]
        %v338 = vld [vmem:[%s232 + $0x50] sm:$0xff]
        %v339 = vld [vmem:[%s232 + $0x58] sm:$0xff]
        %v340 = vld [vmem:[%s232 + $0x60] sm:$0xff]
        %v341 = vld [vmem:[%s232 + $0x68] sm:$0xff]
        %v342 = vld [vmem:[%s232 + $0x70] sm:$0xff]
        %v343 = vld [vmem:[%s232 + $0x78] sm:$0xff]
        %344 = vmatprep.subr.mxu0 0.0
        %345 = vmatpush1.msra.mxu0 %v343
        %346 = vmatprep.subr.mxu0 0.0
        %347 = vmatpush1.msra.mxu0 %v342
        %348 = vmatprep.subr.mxu0 0.0
        %349 = vmatpush1.msra.mxu0 %v341
        %350 = vmatprep.subr.mxu0 0.0
        %351 = vmatpush1.msra.mxu0 %v340
        %352 = vmatprep.subr.mxu0 0.0
        %353 = vmatpush1.msra.mxu0 %v339
        %354 = vmatprep.subr.mxu0 0.0
        %355 = vmatpush1.msra.mxu0 %v338
        %356 = vmatprep.subr.mxu0 0.0
        %357 = vmatpush1.msra.mxu0 %v337
        %358 = vmatprep.subr.mxu0 0.0
        %359 = vmatpush1.msra.mxu0 %v336
        %360 = vmatprep.subr.mxu0 0.0
        %361 = vmatpush1.msra.mxu0 %v335
        %362 = vmatprep.subr.mxu0 0.0
        %363 = vmatpush1.msra.mxu0 %v334
        %364 = vmatprep.subr.mxu0 0.0
        %365 = vmatpush1.msra.mxu0 %v333
        %366 = vmatprep.subr.mxu0 0.0
        %367 = vmatpush1.msra.mxu0 %v332
        %368 = vmatprep.subr.mxu0 0.0
        %369 = vmatpush1.msra.mxu0 %v331
        %370 = vmatprep.subr.mxu0 0.0
        %371 = vmatpush1.msra.mxu0 %v330
        %372 = vmatprep.subr.mxu0 0.0
        %373 = vmatpush1.msra.mxu0 %v329
        %374 = vmatprep.subr.mxu0 0.0
        %375 = vmatpush1.msra.mxu0 %v328
        %376 = vmatprep.subr.mxu0 0.0
        %377 = vmatpush2.msra.mxu0 0.0
        %378 = vmatprep.subr.mxu0 0.0
        %379 = vmatpush2.msra.mxu0 0.0
        %380 = vmatprep.subr.mxu0 0.0
        %381 = vmatpush2.msra.mxu0 0.0
        %382 = vmatprep.subr.mxu0 0.0
        %383 = vmatpush2.msra.mxu0 0.0
        %384 = vmatprep.subr.mxu0 0.0
        %385 = vmatpush2.msra.mxu0 0.0
        %386 = vmatprep.subr.mxu0 0.0
        %387 = vmatpush2.msra.mxu0 0.0
        %388 = vmatprep.subr.mxu0 0.0
        %389 = vmatpush2.msra.mxu0 0.0
        %390 = vmatprep.subr.mxu0 0.0
        %391 = vmatpush2.msra.mxu0 0.0
        %392 = vmatprep.subr.mxu0 0.0
        %393 = vmatpush2.msra.mxu0 0.0
        %394 = vmatprep.subr.mxu0 0.0
        %395 = vmatpush2.msra.mxu0 0.0
        %396 = vmatprep.subr.mxu0 0.0
        %397 = vmatpush2.msra.mxu0 0.0
        %398 = vmatprep.subr.mxu0 0.0
        %399 = vmatpush2.msra.mxu0 0.0
        %400 = vmatprep.subr.mxu0 0.0
        %401 = vmatpush2.msra.mxu0 0.0
        %402 = vmatprep.subr.mxu0 0.0
        %403 = vmatpush2.msra.mxu0 0.0
        %404 = vmatprep.subr.mxu0 0.0
        %405 = vmatpush2.msra.mxu0 0.0
        %406 = vmatprep.subr.mxu0 0.0
        %407 = vmatpush2.msra.mxu0 0.0
        %408 = vmatprep.mubr.f32.mxu0 0.0
        %409 = vmatmul.mubr.f32.gmra.mxu0 %v327
        %v410 = vpop.f32.mrf.mxu0
        %v411 = vadd.f32 0.0, %v410
        %v412 = vpop.f32.mrf.mxu0
        %413 = vdwg.mxu0
        %414 = vst [vmem:[%s218] sm:$0xff] %v411
        %s415 = sand.u32 %s125, 1
        %s416 = scalar_lea.sflag [#allocation3], %s415
        %s417 = sand.u32 %s125, 1
        %s418 = smul.addr %s417, 8
        %s419 = scalar_lea.vmem [#allocation2], %s418
        // Predicated region
        $region37: #{paa_forward.1} parent=35 // pred_check
          %p420 = pneg %p135
        $region38: #{paa_forward.1} parent=35 // pred_check_branch
          %422 = sbr.rel (%p420) target = $region40
        $region39: #{paa_forward.1} parent=35 // pred_region
          %s424 = ssub.s32 128, 128
          %425 = vsyncadd %s416, %s424
          %s426 = smul.addr %s18, 128
          %s427 = scalar_lea.hbm %s4, %s426
          %s429 = sshll.u32 %s419, 4
          %s430 = int_to_ptr.vmem [resolvable:$true] %s429
          %432 = dma.vmem_to_hbm [thread:$0]  %s430, 128, %s427, %s416
        $region40: #{paa_forward.1} parent=35 // pred_fallthru
          _
      $region36: #{paa_forward.1} parent=5 // pred_fallthru
        _
      %p433 = scmp.le.s32.totalorder 2, %s13
      // Predicated region
      $region41: #{paa_forward.1} parent=5 // pred_check
        %p434 = pneg %p433
      $region42: #{paa_forward.1} parent=5 // pred_check_branch
        %436 = sbr.rel (%p434) target = $region44
      $region43: #{paa_forward.1} parent=5 // pred_region
        %s437 = ssub.s32 %s13, 2
        // Predicated region
        $region45: #{paa_forward.1} parent=43 // pred_check
          %p438 = pneg %p141
        $region46: #{paa_forward.1} parent=43 // pred_check_branch
          %440 = sbr.rel (%p438) target = $region48
        $region47: #{paa_forward.1} parent=43 // pred_region
          %s441 = sand.u32 %s126, 1
          %s442 = scalar_lea.sflag [#allocation3], %s441
          %s443 = sand.u32 %s126, 1
          %s444 = smul.addr %s443, 8
          %s445 = scalar_lea.vmem [#allocation2], %s444
          %446 = dma.done %s442, 128
        $region48: #{paa_forward.1} parent=43 // pred_fallthru
          _
      $region44: #{paa_forward.1} parent=5 // pred_fallthru
        _
    $region6: #{paa_forward.1} parent=1 // loop_footer
      %s17 = sadd.s32 1, %s13
    $region7: #{paa_forward.1} parent=1 // loop_footer_branch
      %12 = sbr.rel target = $region3
    $region8: #{paa_forward.1} parent=1 // loop_exit
      _
    %447 = vsyncpa [#allocation3], 1
    %s448 = scalar_lea.sflag [#allocation3], 1
    %449 = vsyncpa %s448, 1

</llo_original>
